<compile_context>
chip_gen: v5e
topology: v5e:2x2
jax: 0.10.0
libtpu: 0.0.40
codegen_flags: <defaults>
</compile_context>

<pallas_src>
import jax
import jax.numpy as jnp
from jax.experimental import pallas as pl
from jax.experimental.pallas import tpu as pltpu


def _pos_add_kernel(x_ref, pos_ref, o_ref):
    # x_ref: (TB, TC) or (TB, TS, D); pos_ref: (1, TC) or (1, TS, D).
    # Broadcasts over the batch axis; add in the promoted dtype (torch
    # promotion semantics), cast on store.
    o_ref[...] = (x_ref[...] + pos_ref[...]).astype(o_ref.dtype)


def _default_target_block_bytes():
    """Per-generation block-byte target (kernel is pure HBM bandwidth)."""
    try:
        kind = jax.devices()[0].device_kind.lower()
    except Exception:
        kind = ""
    if "v5" in kind:
        # ~820 GB/s: a 2-3 MiB step is already ~5 us, per-step overhead <10%.
        return 3 * 1024 * 1024
    if "v6" in kind:
        # ~1.4 TB/s: ~6 MiB blocks cut the ~0.35 us/step overhead to a few %.
        return 6 * 1024 * 1024
    if "v7" in kind or "7x" in kind:
        # ~3.2 TB/s: need ~8 MiB blocks to keep per-step overhead <10%.
        return 8 * 1024 * 1024
    return 4 * 1024 * 1024


def _largest_aligned_divisor(f, cap):
    """Largest d with d | f, d % 128 == 0, d <= cap. Requires f % 128 == 0, cap >= 128."""
    q_total = f // 128
    q_cap = cap // 128
    best = 1
    i = 1
    while i * i <= q_total:
        if q_total % i == 0:
            for q in (i, q_total // i):
                if best < q <= q_cap:
                    best = q
        i += 1
    return best * 128


def _vmem_limit(block_bytes):
    # block_bytes already accounts for double-buffered x + out + pos blocks.
    # Cap at 48 MiB so it stays under v7x's 64 MiB physical VMEM per core while
    # still exceeding the 16/32 MiB scoped defaults when large blocks need it.
    return int(min(48 * 1024 * 1024, max(24 * 1024 * 1024, block_bytes + 4 * 1024 * 1024)))


def learnable_positional_encoding(x, pos_data, *, target_block_bytes=None,
                                  out_dtype=None, donate_x=False):
    """x: (B, S, D); pos_data: (1, max_len, D). Returns x + pos_data[:, :S, :]."""
    B, S, D = x.shape
    if pos_data.ndim != 3 or pos_data.shape[0] != 1 or pos_data.shape[2] != D:
        raise ValueError(f"pos_data shape {pos_data.shape} incompatible with x {x.shape}")
    max_len = pos_data.shape[1]
    if S > max_len:
        raise ValueError(str(S))

    if out_dtype is None:
        # Torch parity: x + parameter promotes.  Pass out_dtype=x.dtype for the
        # bf16-activation / f32-param case to halve the write traffic.
        out_dtype = jnp.promote_types(x.dtype, pos_data.dtype)
    out_dtype = jnp.dtype(out_dtype)
    if target_block_bytes is None:
        target_block_bytes = _default_target_block_bytes()

    x_item = jnp.dtype(x.dtype).itemsize
    p_item = jnp.dtype(pos_data.dtype).itemsize
    o_item = out_dtype.itemsize
    F = S * D
    target_elems = max(8 * 128, target_block_bytes // max(x_item, o_item))

    cost = pl.CostEstimate(flops=B * F, transcendentals=0,
                           bytes_accessed=B * F * (x_item + o_item) + S * D * p_item)
    alias = {0: 0} if (donate_x and jnp.dtype(x.dtype) == out_dtype) else {}

    # ------------------------------------------------------------------ #
    # Lane-dense flattened path: F is a multiple of 128.                  #
    # ------------------------------------------------------------------ #
    if F % 128 == 0:
        x2 = x.reshape(B, F)                      # metadata-only
        pos2 = pos_data.reshape(1, max_len * D)   # metadata-only; blocks read the first F cols

        # Rows first (assuming the columns could take all of F).
        tb = max(1, target_elems // F)
        if tb >= B:
            tb = B
        elif B >= 8:
            tb = max(8, (tb // 8) * 8)            # sublane-aligned partial tiling
        else:
            tb = B

        # Columns second: fill the block out to ~target_block_bytes given tb.
        # (This is the small-batch fix: when tb clamps to B, tc grows instead.)
        tc_cap = max(128, target_elems // tb)
        if tc_cap >= F:
            tc = F
        else:
            tc_div = _largest_aligned_divisor(F, tc_cap)  # no ragged column block
            tc_pad = (tc_cap // 128) * 128                # ragged only in the final block
            tc = tc_div if tc_div * 4 >= tc_pad else tc_pad
        nc = pl.cdiv(F, tc)
        nb = pl.cdiv(B, tb)

        # v7x megacore: ensure the split axis has >= 2 blocks when cheap to do so.
        if nc == 1 and nb == 1 and B >= 16:
            tb = max(8, ((B // 2) // 8) * 8)
            nb = pl.cdiv(B, tb)

        block_bytes = 2 * (tb * tc * (x_item + o_item) + tc * p_item)
        params = pltpu.CompilerParams(
            dimension_semantics=("parallel",) * (1 if nc == 1 else 2),
            vmem_limit_bytes=_vmem_limit(block_bytes))

        if nc == 1:
            grid = (nb,)
            in_specs = [pl.BlockSpec((tb, tc), lambda b: (b, 0)),
                        pl.BlockSpec((1, tc), lambda b: (0, 0))]
            out_spec = pl.BlockSpec((tb, tc), lambda b: (b, 0))
        else:
            # Columns outer, batch inner: pos's block index is constant along
            # the inner loop so its DMA is not re-issued per batch tile.
            grid = (nc, nb)
            in_specs = [pl.BlockSpec((tb, tc), lambda c, b: (b, c)),
                        pl.BlockSpec((1, tc), lambda c, b: (0, c))]
            out_spec = pl.BlockSpec((tb, tc), lambda c, b: (b, c))

        out2 = pl.pallas_call(
            _pos_add_kernel,
            out_shape=jax.ShapeDtypeStruct((B, F), out_dtype),
            grid_spec=pl.GridSpec(grid=grid, in_specs=in_specs, out_specs=out_spec),
            compiler_params=params,
            cost_estimate=cost,
            input_output_aliases=alias,
        )(x2, pos2)
        return out2.reshape(B, S, D)

    # ------------------------------------------------------------------ #
    # Ragged fallback (F % 128 != 0): 3-D blocking, full-D trailing dim.  #
    # pos_data is blocked directly (no wrapper slice / extra HBM pass).   #
    # ------------------------------------------------------------------ #
    if S >= 8:
        tb = max(1, min(B, target_elems // max(1, S * D)))
        ts_cap = max(8, target_elems // max(1, tb * D))
        if S % 8 == 0 and ts_cap >= S:
            ts = S
        else:
            # ts must be a multiple of 8: it is the sublane dim of pos's block,
            # and pos's full seq extent is max_len, not S.
            ts = min((S // 8) * 8, max(8, (ts_cap // 8) * 8))
        ns = pl.cdiv(S, ts)
        nb = pl.cdiv(B, tb)

        block_bytes = 2 * (tb * ts * D * (x_item + o_item) + ts * D * p_item)
        params = pltpu.CompilerParams(
            dimension_semantics=("parallel",) * (1 if ns == 1 else 2),
            vmem_limit_bytes=_vmem_limit(block_bytes))

        if ns == 1:
            grid = (nb,)
            in_specs = [pl.BlockSpec((tb, ts, D), lambda b: (b, 0, 0)),
                        pl.BlockSpec((1, ts, D), lambda b: (0, 0, 0))]
            out_spec = pl.BlockSpec((tb, ts, D), lambda b: (b, 0, 0))
        else:
            # Seq outer, batch inner: pos's block is reused across batch tiles.
            grid = (ns, nb)
            in_specs = [pl.BlockSpec((tb, ts, D), lambda s, b: (b, s, 0)),
                        pl.BlockSpec((1, ts, D), lambda s, b: (0, s, 0))]
            out_spec = pl.BlockSpec((tb, ts, D), lambda s, b: (b, s, 0))

        out = pl.pallas_call(
            _pos_add_kernel,
            out_shape=jax.ShapeDtypeStruct((B, S, D), out_dtype),
            grid_spec=pl.GridSpec(grid=grid, in_specs=in_specs, out_specs=out_spec),
            compiler_params=params,
            cost_estimate=cost,
            input_output_aliases=alias,
        )(x, pos_data)
        return out

    # ------------------------------------------------------------------ #
    # Tiny / very short sequence fallback: one full-extent block.         #
    # ------------------------------------------------------------------ #
    pos_s = jax.lax.slice(pos_data, (0, 0, 0), (1, S, D))  # tiny one-time slice
    block_bytes = 2 * (B * S * D * (x_item + o_item) + S * D * p_item)
    out = pl.pallas_call(
        _pos_add_kernel,
        out_shape=jax.ShapeDtypeStruct((B, S, D), out_dtype),
        grid_spec=pl.GridSpec(
            grid=(1,),
            in_specs=[pl.BlockSpec((B, S, D), lambda i: (0, 0, 0)),
                      pl.BlockSpec((1, S, D), lambda i: (0, 0, 0))],
            out_specs=pl.BlockSpec((B, S, D), lambda i: (0, 0, 0)),
        ),
        compiler_params=pltpu.CompilerParams(
            dimension_semantics=("arbitrary",),
            vmem_limit_bytes=_vmem_limit(block_bytes)),
        cost_estimate=cost,
        input_output_aliases=alias,
    )(x, pos_s)
    return out


if __name__ == "__main__":
    key = jax.random.PRNGKey(0)
    k1, k2, k3, k4, k5, k6 = jax.random.split(key, 6)

    def check(x, pos, **kw):
        y = jax.block_until_ready(learnable_positional_encoding(x, pos, **kw))
        y_ref = x + pos[:, : x.shape[1], :]
        assert y.shape == y_ref.shape
        assert y.dtype == y_ref.dtype
        assert jnp.allclose(y, y_ref, atol=1e-6, rtol=1e-6)

    # 1) module-consistent small shape (lane-dense path, single block).
    B, S, D, MAX_LEN = 2, 8, 32, 64
    x = jax.random.normal(k1, (B, S, D), dtype=jnp.float32)
    pos = 0.01 * jax.random.normal(k2, (1, MAX_LEN, D), dtype=jnp.float32)
    check(x, pos)

    # 2) lane-dense path with multiple column blocks (tc divides F exactly).
    B, S, D, MAX_LEN = 2, 16, 128, 32
    x = jax.random.normal(k3, (B, S, D), dtype=jnp.float32)
    pos = 0.01 * jax.random.normal(k4, (1, MAX_LEN, D), dtype=jnp.float32)
    check(x, pos, target_block_bytes=4096)

    # 3) ragged-D fallback: 3-D blocking with a partial final seq block.
    B, S, D, MAX_LEN = 4, 56, 20, 120
    x = jax.random.normal(k5, (B, S, D), dtype=jnp.float32)
    pos = 0.01 * jax.random.normal(k6, (1, MAX_LEN, D), dtype=jnp.float32)
    check(x, pos, target_block_bytes=4096)

    print("KERNEL_OK")
</pallas_src>

<mosaic_0001>
module attributes {stable_mosaic.version = 11 : i64} {
  func.func @_pos_add_kernel(%arg0: i32, %arg1: memref<2x256xf32, #tpu.memory_space<vmem>>, %arg2: memref<1x256xf32, #tpu.memory_space<vmem>>, %arg3: memref<2x256xf32, #tpu.memory_space<vmem>>) attributes {dimension_semantics = [#tpu.dimension_semantics<parallel>], iteration_bounds = array<i64: 1>, scalar_prefetch = 0 : i64, scratch_operands = 0 : i64, tpu.core_type = #tpu.core_type<tc>, window_params = [{transform_indices = @transform_0, window_bounds = array<i64: 2, 256>}, {transform_indices = @transform_1, window_bounds = array<i64: 1, 256>}, {transform_indices = @transform_2, window_bounds = array<i64: 2, 256>}]} {
    %c0 = arith.constant 0 : index
    %c0_0 = arith.constant 0 : index
    %0 = vector.load %arg1[%c0, %c0_0] : memref<2x256xf32, #tpu.memory_space<vmem>>, vector<2x256xf32>
    %c0_1 = arith.constant 0 : index
    %c0_2 = arith.constant 0 : index
    %1 = vector.load %arg2[%c0_1, %c0_2] : memref<1x256xf32, #tpu.memory_space<vmem>>, vector<1x256xf32>
    %2 = vector.broadcast %1 : vector<1x256xf32> to vector<2x256xf32>
    %3 = arith.addf %0, %2 : vector<2x256xf32>
    %c0_3 = arith.constant 0 : index
    %c0_4 = arith.constant 0 : index
    %4 = vector.load %arg3[%c0_3, %c0_4] : memref<2x256xf32, #tpu.memory_space<vmem>>, vector<2x256xf32>
    tpu.vector_store %arg3[%c0_3, %c0_4], %3 {strides = array<i32>} : memref<2x256xf32, #tpu.memory_space<vmem>>, vector<2x256xf32>,
    return
  }
  func.func @transform_0(%arg0: i32) -> (i32, i32) {
    %c0_i32 = arith.constant 0 : i32
    %c0_i32_0 = arith.constant 0 : i32
    return %arg0, %c0_i32 : i32, i32
  }
  func.func @transform_1(%arg0: i32) -> (i32, i32) {
    %c0_i32 = arith.constant 0 : i32
    %c0_i32_0 = arith.constant 0 : i32
    %c0_i32_1 = arith.constant 0 : i32
    return %c0_i32, %c0_i32_0 : i32, i32
  }
  func.func @transform_2(%arg0: i32) -> (i32, i32) {
    %c0_i32 = arith.constant 0 : i32
    %c0_i32_0 = arith.constant 0 : i32
    return %arg0, %c0_i32 : i32, i32
  }
}

</mosaic_0001>

<llo_original>
// kernel: tpu_custom_call.1
$region0: #{tpu_custom_call.1}
  #allocation0 [shape = 'u32[]', space=smem, size = 0x4, offset = 0x4, fixed_abs, tag = 'smem constant byte address 0x4 - core index']
  #allocation1 [shape = 'u32[72,128]{1,0:T(1,128)}', space=vmem, size = 0x9000, scoped, tag = 'internal scratch']
  %s0 = inlined_call_operand.hbm [shape: f32[2,256], index: 0, kind: input, shape index: {}]
  %s1 = inlined_call_operand.hbm [shape: f32[1,2048], index: 1, kind: input, shape index: {}]
  %s2 = inlined_call_operand.hbm [shape: f32[2,256], index: 2, kind: output, shape index: {}]
  %s3 = sld [smem:[#allocation0]]
  $region26: #{tpu_custom_call.1} parent=0
    _
  %s5 = ssub.s32 1, %s3
  %s6 = scalar_select 0, %s5, %s3
  $region1: #{tpu_custom_call.1} parent=0
    #allocation2 [shape = 'u8[2048]{0}', space=vmem, size = 0x800, scoped, tag = 'input window, operand 0, single buffered']
    #allocation3 [shape = 's32[1]{0}', space=sflag, size = 0x4, scoped, tag = 'scoped memory for tpu_custom_call.1']
    #allocation4 [shape = 's32[1]{0}', space=sflag, size = 0x4, scoped, tag = 'scoped memory for tpu_custom_call.1']
    #allocation5 [shape = 'u8[1024]{0}', space=vmem, size = 0x400, scoped, tag = 'input window, operand 1, single buffered']
    #allocation6 [shape = 's32[1]{0}', space=sflag, size = 0x4, scoped, tag = 'scoped memory for tpu_custom_call.1']
    #allocation7 [shape = 'u8[2048]{0}', space=vmem, size = 0x800, scoped, tag = 'output window, operand 0, single buffered']
    %7 = vsyncpa [#allocation3], 0
    %8 = vsyncpa [#allocation6], 0
    %9 = vsyncpa [#allocation4], 0
    // Predicated region
    $region2: #{tpu_custom_call.1} parent=1 // pred_check
      _
    $region3: #{tpu_custom_call.1} parent=1 // pred_check_branch
      %11 = sbr.rel (0) target = $region5
    $region4: #{tpu_custom_call.1} parent=1 // pred_region
      %13 = vsyncadd [#allocation3], 0
      %s15 = sshll.u32 %s0, 4
      %s16 = int_to_ptr.hbm [resolvable:$true] %s15
      %s17 = sshll.u32 [#allocation2], 4
      %s18 = int_to_ptr.vmem [resolvable:$true] %s17
      %20 = dma.hbm_to_vmem [thread:$0]  %s16, 64, %s18, [#allocation3]
    $region5: #{tpu_custom_call.1} parent=1 // pred_fallthru
      _
    // Predicated region
    $region6: #{tpu_custom_call.1} parent=1 // pred_check
      _
    $region7: #{tpu_custom_call.1} parent=1 // pred_check_branch
      %22 = sbr.rel (0) target = $region9
    $region8: #{tpu_custom_call.1} parent=1 // pred_region
      %24 = vsyncadd [#allocation6], 0
      %s26 = sshll.u32 %s1, 4
      %s27 = int_to_ptr.hbm [resolvable:$true] %s26
      %s28 = sshll.u32 [#allocation5], 4
      %s29 = int_to_ptr.vmem [resolvable:$true] %s28
      %31 = dma.hbm_to_vmem [thread:$0]  %s27, 32, %s29, [#allocation6]
    $region9: #{tpu_custom_call.1} parent=1 // pred_fallthru
      _
    // Predicated region
    $region10: #{tpu_custom_call.1} parent=1 // pred_check
      _
    $region11: #{tpu_custom_call.1} parent=1 // pred_check_branch
      %33 = sbr.rel (0) target = $region13
    $region12: #{tpu_custom_call.1} parent=1 // pred_region
      %35 = dma.done [#allocation3], 64
    $region13: #{tpu_custom_call.1} parent=1 // pred_fallthru
      _
    // Predicated region
    $region14: #{tpu_custom_call.1} parent=1 // pred_check
      _
    $region15: #{tpu_custom_call.1} parent=1 // pred_check_branch
      %37 = sbr.rel (0) target = $region17
    $region16: #{tpu_custom_call.1} parent=1 // pred_region
      %39 = dma.done [#allocation6], 32
    $region17: #{tpu_custom_call.1} parent=1 // pred_fallthru
      _
    %v40 = vld [vmem:[#allocation2] sm:$0xf]
    %v41 = vld [vmem:[#allocation5] sm:$0x3]
    %v43 = vperm.slane %v41, 0
    %v44 = vperm.slane %v41, 1
    %v45 = vrot.slane %v44, 6
    %vm46 = vcmask 1041408
    %v47 = vsel %vm46, %v43, %v45
    %v49 = vadd.f32 %v40, %v47
    %50 = vst [vmem:[#allocation7] sm:$0xf] %v49
    // Predicated region
    $region18: #{tpu_custom_call.1} parent=1 // pred_check
      _
    $region19: #{tpu_custom_call.1} parent=1 // pred_check_branch
      %52 = sbr.rel (0) target = $region21
    $region20: #{tpu_custom_call.1} parent=1 // pred_region
      %54 = vsyncadd [#allocation4], 0
      %s56 = sshll.u32 [#allocation7], 4
      %s57 = int_to_ptr.vmem [resolvable:$true] %s56
      %s58 = sshll.u32 %s2, 4
      %s59 = int_to_ptr.hbm [resolvable:$true] %s58
      %61 = dma.vmem_to_hbm [thread:$0]  %s57, 64, %s59, [#allocation4]
    $region21: #{tpu_custom_call.1} parent=1 // pred_fallthru
      _
    // Predicated region
    $region22: #{tpu_custom_call.1} parent=1 // pred_check
      _
    $region23: #{tpu_custom_call.1} parent=1 // pred_check_branch
      %63 = sbr.rel (0) target = $region25
    $region24: #{tpu_custom_call.1} parent=1 // pred_region
      %65 = dma.done [#allocation4], 64
    $region25: #{tpu_custom_call.1} parent=1 // pred_fallthru
      _
    %66 = vsyncpa [#allocation3], 1
    %67 = vsyncpa [#allocation6], 1
    %68 = vsyncpa [#allocation4], 1

</llo_original>
